<compile_context>
chip_gen: v5e
topology: v5e:2x2
jax: 0.10.0
libtpu: 0.0.40
codegen_flags: <defaults>
</compile_context>

<pallas_src>
import functools

import jax
import jax.numpy as jnp
from jax.experimental import pallas as pl
from jax.experimental.pallas import tpu as pltpu


def _round_up(n, m):
    return ((n + m - 1) // m) * m


def _device_kind():
    try:
        return jax.devices()[0].device_kind.lower()
    except Exception:
        return ""


def _vmem_capacity_bytes():
    """Per-core VMEM capacity, generation-aware, with safe fallbacks."""
    try:
        info = pltpu.get_tpu_info()
        cap = getattr(info, "vmem_capacity_bytes", None)
        if cap:
            return int(cap)
    except Exception:
        pass
    kind = _device_kind()
    if "7" in kind:            # v7x: 64 MiB per TensorCore
        return 64 << 20
    return 128 << 20           # v5e / v6e


def _default_batch_tile():
    kind = _device_kind()
    # v5e MXU is 4x128x128: TB=128 already fills the M dim.  v6e/v7x MXUs are
    # 256-wide, so larger tiles fill M and amortize the ~0.35us/step overhead.
    if "v5 lite" in kind or "v5e" in kind:
        return 128
    return 512


def _mlp_vi_kernel(x_ref,
                   w1_ref, b1_ref,
                   w2_ref, b2_ref,
                   wh_ref, bh_ref,
                   o_ref):
    """One batch tile of the fused 3-layer VI MLP.

    x_ref  : [TB, In]   compute dtype (bf16 or f32), batch-tiled
    wN_ref : [K,  N]    pre-folded effective weights (VMEM-resident)
    bN_ref : [1,  N]    pre-folded effective biases, f32 (VMEM-resident)
    o_ref  : [TB, Out]  out dtype, batch-tiled
    """
    cdt = w1_ref.dtype  # compute dtype for MXU operands

    h = x_ref[...]
    a1 = jnp.dot(h, w1_ref[...], preferred_element_type=jnp.float32) + b1_ref[...]
    h1 = jnp.maximum(a1, 0.0).astype(cdt)      # ReLU on f32 accumulator, then cast

    a2 = jnp.dot(h1, w2_ref[...], preferred_element_type=jnp.float32) + b2_ref[...]
    h2 = jnp.maximum(a2, 0.0).astype(cdt)

    o_ref[...] = (jnp.dot(h2, wh_ref[...], preferred_element_type=jnp.float32)
                  + bh_ref[...]).astype(o_ref.dtype)


def mlp_vi_forward(x_nchw, params, noise, *, tb=None,
                   compute_dtype=jnp.bfloat16, out_dtype=None,
                   single_buffer_weights=True):
    """Flatten NCHW input, fold effective weights once, run the batch-gridded kernel.

    params/noise: dicts keyed by layer ("1", "2", "head") holding
      W_mu [out, in], b_mu [out], W_lv [out, in], b_lv [out],
      eps_W [out, in], eps_b [out]   (PyTorch nn.Linear conventions).
    """
    if out_dtype is None:
        out_dtype = compute_dtype

    B = x_nchw.shape[0]
    x = x_nchw.reshape(B, -1)                        # [B, in_dim]
    in_dim = x.shape[1]
    hidden = params["1"]["W_mu"].shape[0]
    out_dim = params["head"]["W_mu"].shape[0]

    cbytes = jnp.dtype(compute_dtype).itemsize
    obytes = jnp.dtype(out_dtype).itemsize
    sub = 16 if cbytes == 2 else 8                   # sublane multiple for batch tile

    # Lane-align all feature dims to 128.
    In = _round_up(in_dim, 128)
    Hd = _round_up(hidden, 128)
    Out = _round_up(out_dim, 128)

    # Sanitize/derive the batch tile.
    if tb is None:
        tb = _default_batch_tile()
    tb = max(_round_up(int(tb), sub), sub)
    Bsub = _round_up(B, sub)
    TB = min(Bsub, tb)
    # Ensure >=2 grid steps when the batch permits: v7x has 2 TensorCores and
    # the batch axis is "parallel"; costs only ~0.35us/step on single-TC chips.
    if Bsub >= 2 * sub and Bsub < 2 * TB:
        TB = _round_up(Bsub // 2, sub)
    Bp = _round_up(B, TB)

    def fold(layer, k_pad, n_pad):
        """w_eff/b_eff folded once in f32, transposed to [in, out], zero-padded, cast."""
        p, n = params[layer], noise[layer]
        w = p["W_mu"] + jnp.exp(0.5 * p["W_lv"]) * n["eps_W"]      # [out, in], f32
        b = p["b_mu"] + jnp.exp(0.5 * p["b_lv"]) * n["eps_b"]      # [out],     f32
        w = w.T                                                    # [in, out]
        w = jnp.pad(w, ((0, k_pad - w.shape[0]), (0, n_pad - w.shape[1])))
        b = jnp.pad(b, (0, n_pad - b.shape[0])).reshape(1, n_pad)
        return w.astype(compute_dtype), b.astype(jnp.float32)

    w1, b1 = fold("1", In, Hd)
    w2, b2 = fold("2", Hd, Hd)
    wh, bh = fold("head", Hd, Out)

    # Cast to compute dtype before padding (no extra f32 materialization).
    xp = jnp.pad(x.astype(compute_dtype), ((0, Bp - B), (0, In - in_dim)))

    # ---- VMEM budget: resident weights/biases (x1 if single-buffered, else x2)
    #      + double-buffered x/out tiles + f32 intermediate activations + headroom.
    w_bytes = (In * Hd + Hd * Hd + Hd * Out) * cbytes
    b_bytes = (2 * Hd + Out) * 4
    wmult = 1 if single_buffer_weights else 2
    tile_bytes = 2 * (TB * In * cbytes + TB * Out * obytes)
    act_bytes = 2 * TB * Hd * (4 + cbytes)           # a1/h1 and a2/h2
    need = wmult * (w_bytes + b_bytes) + tile_bytes + act_bytes + (8 << 20)
    vmem_cap = _vmem_capacity_bytes()
    vmem_limit = int(min(max(need, 32 << 20), int(0.85 * vmem_cap)))
    # NOTE: if bf16 weights + single-buffering still exceed the cap (very large
    # hidden dims, esp. on v7x's 64 MiB/TC), stream the Hd x Hd layer-2 weight
    # over an extra "arbitrary" grid axis instead of shrinking TB.

    def resident(shape):
        """Weights/biases: constant index_map => DMA'd exactly once; request a
        single buffer to halve the resident footprint (with safe fallback)."""
        idx = lambda i: (0, 0)
        if single_buffer_weights and hasattr(pl, "Buffered"):
            try:
                return pl.BlockSpec(shape, idx, pipeline_mode=pl.Buffered(1))
            except TypeError:
                pass
        return pl.BlockSpec(shape, idx)

    flops = 2 * Bp * (In * Hd + Hd * Hd + Hd * Out)
    bytes_accessed = (Bp * In * cbytes + w_bytes + b_bytes + Bp * Out * obytes)
    cost = pl.CostEstimate(flops=flops, transcendentals=0,
                           bytes_accessed=bytes_accessed)

    out = pl.pallas_call(
        _mlp_vi_kernel,
        out_shape=jax.ShapeDtypeStruct((Bp, Out), out_dtype),
        grid=(Bp // TB,),
        in_specs=[
            pl.BlockSpec((TB, In), lambda i: (i, 0)),   # x: batch-tiled
            resident((In, Hd)), resident((1, Hd)),      # layer 1 (resident)
            resident((Hd, Hd)), resident((1, Hd)),      # layer 2 (resident)
            resident((Hd, Out)), resident((1, Out)),    # head    (resident)
        ],
        out_specs=pl.BlockSpec((TB, Out), lambda i: (i, 0)),
        compiler_params=pltpu.CompilerParams(
            dimension_semantics=("parallel",),
            vmem_limit_bytes=vmem_limit,
        ),
        cost_estimate=cost,
    )(xp, w1, b1, w2, b2, wh, bh)

    return out[:B, :out_dim]


def _init_params_and_noise(key, in_dim, hidden_dim, out_dim, sigma_0=-6.0):
    """Synthetic init matching the module's shapes.

    mu layers ~ nn.Linear default (U[-1/sqrt(fan_in), 1/sqrt(fan_in)]);
    log_var layers init.constant_(sigma_0) as in initialize_weights_biases;
    eps ~ N(0, 1) (torch.randn_like in Exponentiated_Noised_Linear.forward).
    """
    dims = {"1": (in_dim, hidden_dim), "2": (hidden_dim, hidden_dim),
            "head": (hidden_dim, out_dim)}
    params, noise = {}, {}
    for name, (fi, fo) in dims.items():
        key, kw, kb, kew, keb = jax.random.split(key, 5)
        bound = 1.0 / jnp.sqrt(fi)
        params[name] = {
            "W_mu": jax.random.uniform(kw, (fo, fi), jnp.float32, -bound, bound),
            "b_mu": jax.random.uniform(kb, (fo,), jnp.float32, -bound, bound),
            "W_lv": jnp.full((fo, fi), sigma_0, jnp.float32),
            "b_lv": jnp.full((fo,), sigma_0, jnp.float32),
        }
        noise[name] = {
            "eps_W": jax.random.normal(kew, (fo, fi), jnp.float32),
            "eps_b": jax.random.normal(keb, (fo,), jnp.float32),
        }
    return params, noise


def _reference_forward(x_nchw, params, noise):
    """Pure-JAX f32 reference mirroring the PyTorch forward."""
    x = x_nchw.reshape(x_nchw.shape[0], -1).astype(jnp.float32)

    def layer(h, name):
        p, n = params[name], noise[name]
        mu = h @ p["W_mu"].T + p["b_mu"]
        W_noised = jnp.exp(0.5 * p["W_lv"]) * n["eps_W"]
        b_noised = jnp.exp(0.5 * p["b_lv"]) * n["eps_b"]
        return mu + h @ W_noised.T + b_noised

    h = jax.nn.relu(layer(x, "1"))
    h = jax.nn.relu(layer(h, "2"))
    return layer(h, "head")


if __name__ == "__main__":
    # Small permuted-MNIST-like shapes: x is NCHW [B=2, C=1, H=8, W=8] -> in_dim=64.
    B, C, H, W = 2, 1, 8, 8
    in_dim, hidden_dim, out_dim = C * H * W, 32, 10

    key = jax.random.PRNGKey(0)
    key, kx = jax.random.split(key)
    x = jax.random.normal(kx, (B, C, H, W), jnp.float32)

    params, noise = _init_params_and_noise(key, in_dim, hidden_dim, out_dim)
    ref = _reference_forward(x, params, noise)

    def run(compute_dtype, out_dtype):
        """Run with single-buffered resident weights; fall back to default
        double-buffering if this jax build rejects pipeline_mode/Buffered(1)."""
        last_err = None
        for single_buf in (True, False):
            fwd = jax.jit(functools.partial(
                mlp_vi_forward, compute_dtype=compute_dtype, out_dtype=out_dtype,
                single_buffer_weights=single_buf))
            try:
                return jax.block_until_ready(fwd(x, params, noise))
            except Exception as e:   # pragma: no cover - robustness fallback
                last_err = e
        raise last_err

    # f32 compute + f32 output: tight tolerance, proves exact semantics.
    out_f32 = run(jnp.float32, jnp.float32)
    assert out_f32.shape == (B, out_dim)
    assert jnp.allclose(out_f32, ref, atol=1e-4, rtol=1e-4), "f32 kernel mismatch vs reference"

    # bf16 MXU operands, f32 accumulation, bf16 output writeback.
    out_bf16 = run(jnp.bfloat16, jnp.bfloat16)
    assert out_bf16.shape == (B, out_dim)
    assert jnp.allclose(out_bf16.astype(jnp.float32), ref, atol=3e-2, rtol=3e-2), \
        "bf16 kernel mismatch vs reference"

    print("KERNEL_OK")
</pallas_src>

<mosaic_0001>
module attributes {stable_mosaic.version = 11 : i64} {
  func.func @_mlp_vi_kernel(%arg0: i32, %arg1: memref<8x128xf32, #tpu.memory_space<vmem>>, %arg2: memref<128x128xf32, #tpu.memory_space<vmem>>, %arg3: memref<1x128xf32, #tpu.memory_space<vmem>>, %arg4: memref<128x128xf32, #tpu.memory_space<vmem>>, %arg5: memref<1x128xf32, #tpu.memory_space<vmem>>, %arg6: memref<128x128xf32, #tpu.memory_space<vmem>>, %arg7: memref<1x128xf32, #tpu.memory_space<vmem>>, %arg8: memref<8x128xf32, #tpu.memory_space<vmem>>) attributes {dimension_semantics = [#tpu.dimension_semantics<parallel>], iteration_bounds = array<i64: 1>, scalar_prefetch = 0 : i64, scratch_operands = 0 : i64, tpu.core_type = #tpu.core_type<tc>, window_params = [{transform_indices = @transform_0, window_bounds = array<i64: 8, 128>}, {pipeline_mode = #tpu.pipeline_mode<synchronous>, transform_indices = @transform_1, window_bounds = array<i64: 128, 128>}, {pipeline_mode = #tpu.pipeline_mode<synchronous>, transform_indices = @transform_2, window_bounds = array<i64: 1, 128>}, {pipeline_mode = #tpu.pipeline_mode<synchronous>, transform_indices = @transform_3, window_bounds = array<i64: 128, 128>}, {pipeline_mode = #tpu.pipeline_mode<synchronous>, transform_indices = @transform_4, window_bounds = array<i64: 1, 128>}, {pipeline_mode = #tpu.pipeline_mode<synchronous>, transform_indices = @transform_5, window_bounds = array<i64: 128, 128>}, {pipeline_mode = #tpu.pipeline_mode<synchronous>, transform_indices = @transform_6, window_bounds = array<i64: 1, 128>}, {transform_indices = @transform_7, window_bounds = array<i64: 8, 128>}]} {
    %c0 = arith.constant 0 : index
    %c0_0 = arith.constant 0 : index
    %0 = vector.load %arg1[%c0, %c0_0] : memref<8x128xf32, #tpu.memory_space<vmem>>, vector<8x128xf32>
    %c0_1 = arith.constant 0 : index
    %c0_2 = arith.constant 0 : index
    %1 = vector.load %arg2[%c0_1, %c0_2] : memref<128x128xf32, #tpu.memory_space<vmem>>, vector<128x128xf32>
    %cst = arith.constant dense<0.000000e+00> : vector<8x128xf32>
    %2 = tpu.matmul %0, %1, %cst {dimension_numbers = #tpu.dot_dimension_numbers<[1], [0], [0], [1], [0, 0, 1, 1], [], []>} : vector<8x128xf32>, vector<128x128xf32>, vector<8x128xf32> -> vector<8x128xf32>
    %c0_3 = arith.constant 0 : index
    %c0_4 = arith.constant 0 : index
    %3 = vector.load %arg3[%c0_3, %c0_4] : memref<1x128xf32, #tpu.memory_space<vmem>>, vector<1x128xf32>
    %4 = vector.broadcast %3 : vector<1x128xf32> to vector<8x128xf32>
    %5 = arith.addf %2, %4 : vector<8x128xf32>
    %cst_5 = arith.constant 0.000000e+00 : f32
    %6 = vector.broadcast %cst_5 : f32 to vector<8x128xf32>
    %7 = arith.maximumf %5, %6 : vector<8x128xf32>
    %c0_6 = arith.constant 0 : index
    %c0_7 = arith.constant 0 : index
    %8 = vector.load %arg4[%c0_6, %c0_7] : memref<128x128xf32, #tpu.memory_space<vmem>>, vector<128x128xf32>
    %cst_8 = arith.constant dense<0.000000e+00> : vector<8x128xf32>
    %9 = tpu.matmul %7, %8, %cst_8 {dimension_numbers = #tpu.dot_dimension_numbers<[1], [0], [0], [1], [0, 0, 1, 1], [], []>} : vector<8x128xf32>, vector<128x128xf32>, vector<8x128xf32> -> vector<8x128xf32>
    %c0_9 = arith.constant 0 : index
    %c0_10 = arith.constant 0 : index
    %10 = vector.load %arg5[%c0_9, %c0_10] : memref<1x128xf32, #tpu.memory_space<vmem>>, vector<1x128xf32>
    %11 = vector.broadcast %10 : vector<1x128xf32> to vector<8x128xf32>
    %12 = arith.addf %9, %11 : vector<8x128xf32>
    %cst_11 = arith.constant 0.000000e+00 : f32
    %13 = vector.broadcast %cst_11 : f32 to vector<8x128xf32>
    %14 = arith.maximumf %12, %13 : vector<8x128xf32>
    %c0_12 = arith.constant 0 : index
    %c0_13 = arith.constant 0 : index
    %15 = vector.load %arg6[%c0_12, %c0_13] : memref<128x128xf32, #tpu.memory_space<vmem>>, vector<128x128xf32>
    %cst_14 = arith.constant dense<0.000000e+00> : vector<8x128xf32>
    %16 = tpu.matmul %14, %15, %cst_14 {dimension_numbers = #tpu.dot_dimension_numbers<[1], [0], [0], [1], [0, 0, 1, 1], [], []>} : vector<8x128xf32>, vector<128x128xf32>, vector<8x128xf32> -> vector<8x128xf32>
    %c0_15 = arith.constant 0 : index
    %c0_16 = arith.constant 0 : index
    %17 = vector.load %arg7[%c0_15, %c0_16] : memref<1x128xf32, #tpu.memory_space<vmem>>, vector<1x128xf32>
    %18 = vector.broadcast %17 : vector<1x128xf32> to vector<8x128xf32>
    %19 = arith.addf %16, %18 : vector<8x128xf32>
    %c0_17 = arith.constant 0 : index
    %c0_18 = arith.constant 0 : index
    %20 = vector.load %arg8[%c0_17, %c0_18] : memref<8x128xf32, #tpu.memory_space<vmem>>, vector<8x128xf32>
    tpu.vector_store %arg8[%c0_17, %c0_18], %19 {strides = array<i32>} : memref<8x128xf32, #tpu.memory_space<vmem>>, vector<8x128xf32>,
    return
  }
  func.func @transform_0(%arg0: i32) -> (i32, i32) {
    %c0_i32 = arith.constant 0 : i32
    %c0_i32_0 = arith.constant 0 : i32
    return %arg0, %c0_i32 : i32, i32
  }
  func.func @transform_1(%arg0: i32) -> (i32, i32) {
    %c0_i32 = arith.constant 0 : i32
    %c0_i32_0 = arith.constant 0 : i32
    %c0_i32_1 = arith.constant 0 : i32
    return %c0_i32, %c0_i32_0 : i32, i32
  }
  func.func @transform_2(%arg0: i32) -> (i32, i32) {
    %c0_i32 = arith.constant 0 : i32
    %c0_i32_0 = arith.constant 0 : i32
    %c0_i32_1 = arith.constant 0 : i32
    return %c0_i32, %c0_i32_0 : i32, i32
  }
  func.func @transform_3(%arg0: i32) -> (i32, i32) {
    %c0_i32 = arith.constant 0 : i32
    %c0_i32_0 = arith.constant 0 : i32
    %c0_i32_1 = arith.constant 0 : i32
    return %c0_i32, %c0_i32_0 : i32, i32
  }
  func.func @transform_4(%arg0: i32) -> (i32, i32) {
    %c0_i32 = arith.constant 0 : i32
    %c0_i32_0 = arith.constant 0 : i32
    %c0_i32_1 = arith.constant 0 : i32
    return %c0_i32, %c0_i32_0 : i32, i32
  }
  func.func @transform_5(%arg0: i32) -> (i32, i32) {
    %c0_i32 = arith.constant 0 : i32
    %c0_i32_0 = arith.constant 0 : i32
    %c0_i32_1 = arith.constant 0 : i32
    return %c0_i32, %c0_i32_0 : i32, i32
  }
  func.func @transform_6(%arg0: i32) -> (i32, i32) {
    %c0_i32 = arith.constant 0 : i32
    %c0_i32_0 = arith.constant 0 : i32
    %c0_i32_1 = arith.constant 0 : i32
    return %c0_i32, %c0_i32_0 : i32, i32
  }
  func.func @transform_7(%arg0: i32) -> (i32, i32) {
    %c0_i32 = arith.constant 0 : i32
    %c0_i32_0 = arith.constant 0 : i32
    return %arg0, %c0_i32 : i32, i32
  }
}

module attributes {stable_mosaic.version = 11 : i64} {
  func.func @_mlp_vi_kernel(%arg0: i32, %arg1: memref<8x128xf32, #tpu.memory_space<vmem>>, %arg2: memref<128x128xf32, #tpu.memory_space<vmem>>, %arg3: memref<1x128xf32, #tpu.memory_space<vmem>>, %arg4: memref<128x128xf32, #tpu.memory_space<vmem>>, %arg5: memref<1x128xf32, #tpu.memory_space<vmem>>, %arg6: memref<128x128xf32, #tpu.memory_space<vmem>>, %arg7: memref<1x128xf32, #tpu.memory_space<vmem>>, %arg8: memref<8x128xf32, #tpu.memory_space<vmem>>) attributes {dimension_semantics = [#tpu.dimension_semantics<parallel>], iteration_bounds = array<i64: 1>, scalar_prefetch = 0 : i64, scratch_operands = 0 : i64, tpu.core_type = #tpu.core_type<tc>, window_params = [{transform_indices = @transform_0, window_bounds = array<i64: 8, 128>}, {pipeline_mode = #tpu.pipeline_mode<synchronous>, transform_indices = @transform_1, window_bounds = array<i64: 128, 128>}, {pipeline_mode = #tpu.pipeline_mode<synchronous>, transform_indices = @transform_2, window_bounds = array<i64: 1, 128>}, {pipeline_mode = #tpu.pipeline_mode<synchronous>, transform_indices = @transform_3, window_bounds = array<i64: 128, 128>}, {pipeline_mode = #tpu.pipeline_mode<synchronous>, transform_indices = @transform_4, window_bounds = array<i64: 1, 128>}, {pipeline_mode = #tpu.pipeline_mode<synchronous>, transform_indices = @transform_5, window_bounds = array<i64: 128, 128>}, {pipeline_mode = #tpu.pipeline_mode<synchronous>, transform_indices = @transform_6, window_bounds = array<i64: 1, 128>}, {transform_indices = @transform_7, window_bounds = array<i64: 8, 128>}]} {
    %c0 = arith.constant 0 : index
    %c0_0 = arith.constant 0 : index
    %0 = vector.load %arg1[%c0, %c0_0] : memref<8x128xf32, #tpu.memory_space<vmem>>, vector<8x128xf32>
    %c0_1 = arith.constant 0 : index
    %c0_2 = arith.constant 0 : index
    %1 = vector.load %arg2[%c0_1, %c0_2] : memref<128x128xf32, #tpu.memory_space<vmem>>, vector<128x128xf32>
    %cst = arith.constant dense<0.000000e+00> : vector<8x128xf32>
    %2 = tpu.matmul %0, %1, %cst {dimension_numbers = #tpu.dot_dimension_numbers<[1], [0], [0], [1], [0, 0, 1, 1], [], []>} : vector<8x128xf32>, vector<128x128xf32>, vector<8x128xf32> -> vector<8x128xf32>
    %c0_3 = arith.constant 0 : index
    %c0_4 = arith.constant 0 : index
    %3 = vector.load %arg3[%c0_3, %c0_4] : memref<1x128xf32, #tpu.memory_space<vmem>>, vector<1x128xf32>
    %4 = vector.broadcast %3 : vector<1x128xf32> to vector<8x128xf32>
    %5 = arith.addf %2, %4 : vector<8x128xf32>
    %cst_5 = arith.constant 0.000000e+00 : f32
    %6 = vector.broadcast %cst_5 : f32 to vector<8x128xf32>
    %7 = arith.maximumf %5, %6 : vector<8x128xf32>
    %c0_6 = arith.constant 0 : index
    %c0_7 = arith.constant 0 : index
    %8 = vector.load %arg4[%c0_6, %c0_7] : memref<128x128xf32, #tpu.memory_space<vmem>>, vector<128x128xf32>
    %cst_8 = arith.constant dense<0.000000e+00> : vector<8x128xf32>
    %9 = tpu.matmul %7, %8, %cst_8 {dimension_numbers = #tpu.dot_dimension_numbers<[1], [0], [0], [1], [0, 0, 1, 1], [], []>} : vector<8x128xf32>, vector<128x128xf32>, vector<8x128xf32> -> vector<8x128xf32>
    %c0_9 = arith.constant 0 : index
    %c0_10 = arith.constant 0 : index
    %10 = vector.load %arg5[%c0_9, %c0_10] : memref<1x128xf32, #tpu.memory_space<vmem>>, vector<1x128xf32>
    %11 = vector.broadcast %10 : vector<1x128xf32> to vector<8x128xf32>
    %12 = arith.addf %9, %11 : vector<8x128xf32>
    %cst_11 = arith.constant 0.000000e+00 : f32
    %13 = vector.broadcast %cst_11 : f32 to vector<8x128xf32>
    %14 = arith.maximumf %12, %13 : vector<8x128xf32>
    %c0_12 = arith.constant 0 : index
    %c0_13 = arith.constant 0 : index
    %15 = vector.load %arg6[%c0_12, %c0_13] : memref<128x128xf32, #tpu.memory_space<vmem>>, vector<128x128xf32>
    %cst_14 = arith.constant dense<0.000000e+00> : vector<8x128xf32>
    %16 = tpu.matmul %14, %15, %cst_14 {dimension_numbers = #tpu.dot_dimension_numbers<[1], [0], [0], [1], [0, 0, 1, 1], [], []>} : vector<8x128xf32>, vector<128x128xf32>, vector<8x128xf32> -> vector<8x128xf32>
    %c0_15 = arith.constant 0 : index
    %c0_16 = arith.constant 0 : index
    %17 = vector.load %arg7[%c0_15, %c0_16] : memref<1x128xf32, #tpu.memory_space<vmem>>, vector<1x128xf32>
    %18 = vector.broadcast %17 : vector<1x128xf32> to vector<8x128xf32>
    %19 = arith.addf %16, %18 : vector<8x128xf32>
    %c0_17 = arith.constant 0 : index
    %c0_18 = arith.constant 0 : index
    %20 = vector.load %arg8[%c0_17, %c0_18] : memref<8x128xf32, #tpu.memory_space<vmem>>, vector<8x128xf32>
    tpu.vector_store %arg8[%c0_17, %c0_18], %19 {strides = array<i32>} : memref<8x128xf32, #tpu.memory_space<vmem>>, vector<8x128xf32>,
    return
  }
  func.func @transform_0(%arg0: i32) -> (i32, i32) {
    %c0_i32 = arith.constant 0 : i32
    %c0_i32_0 = arith.constant 0 : i32
    return %arg0, %c0_i32 : i32, i32
  }
  func.func @transform_1(%arg0: i32) -> (i32, i32) {
    %c0_i32 = arith.constant 0 : i32
    %c0_i32_0 = arith.constant 0 : i32
    %c0_i32_1 = arith.constant 0 : i32
    return %c0_i32, %c0_i32_0 : i32, i32
  }
  func.func @transform_2(%arg0: i32) -> (i32, i32) {
    %c0_i32 = arith.constant 0 : i32
    %c0_i32_0 = arith.constant 0 : i32
    %c0_i32_1 = arith.constant 0 : i32
    return %c0_i32, %c0_i32_0 : i32, i32
  }
  func.func @transform_3(%arg0: i32) -> (i32, i32) {
    %c0_i32 = arith.constant 0 : i32
    %c0_i32_0 = arith.constant 0 : i32
    %c0_i32_1 = arith.constant 0 : i32
    return %c0_i32, %c0_i32_0 : i32, i32
  }
  func.func @transform_4(%arg0: i32) -> (i32, i32) {
    %c0_i32 = arith.constant 0 : i32
    %c0_i32_0 = arith.constant 0 : i32
    %c0_i32_1 = arith.constant 0 : i32
    return %c0_i32, %c0_i32_0 : i32, i32
  }
  func.func @transform_5(%arg0: i32) -> (i32, i32) {
    %c0_i32 = arith.constant 0 : i32
    %c0_i32_0 = arith.constant 0 : i32
    %c0_i32_1 = arith.constant 0 : i32
    return %c0_i32, %c0_i32_0 : i32, i32
  }
  func.func @transform_6(%arg0: i32) -> (i32, i32) {
    %c0_i32 = arith.constant 0 : i32
    %c0_i32_0 = arith.constant 0 : i32
    %c0_i32_1 = arith.constant 0 : i32
    return %c0_i32, %c0_i32_0 : i32, i32
  }
  func.func @transform_7(%arg0: i32) -> (i32, i32) {
    %c0_i32 = arith.constant 0 : i32
    %c0_i32_0 = arith.constant 0 : i32
    return %arg0, %c0_i32 : i32, i32
  }
}

</mosaic_0001>

<llo_original>
// kernel: mlp_vi_forward.1
$region0: #{mlp_vi_forward.1}
  #allocation0 [shape = 'u32[]', space=smem, size = 0x4, offset = 0x4, fixed_abs, tag = 'smem constant byte address 0x4 - core index']
  #allocation1 [shape = 'u32[72,128]{1,0:T(1,128)}', space=vmem, size = 0x9000, scoped, tag = 'internal scratch']
  %s0 = inlined_call_operand.vmem [shape: f32[8,128], index: 0, kind: input, shape index: {}]
  %s1 = inlined_call_operand.vmem [shape: f32[128,128], index: 1, kind: input, shape index: {}]
  %s2 = inlined_call_operand.vmem [shape: f32[1,128], index: 2, kind: input, shape index: {}]
  %s3 = inlined_call_operand.vmem [shape: f32[128,128], index: 3, kind: input, shape index: {}]
  %s4 = inlined_call_operand.vmem [shape: f32[1,128], index: 4, kind: input, shape index: {}]
  %s5 = inlined_call_operand.vmem [shape: f32[128,128], index: 5, kind: input, shape index: {}]
  %s6 = inlined_call_operand.vmem [shape: f32[1,128], index: 6, kind: input, shape index: {}]
  %s7 = inlined_call_operand.vmem [shape: f32[8,128], index: 7, kind: output, shape index: {}]
  %s8 = sld [smem:[#allocation0]]
  $region38: #{mlp_vi_forward.1} parent=0
    _
  %s10 = ssub.s32 1, %s8
  %s11 = scalar_select 0, %s10, %s8
  // Predicated region
  $region2: #{mlp_vi_forward.1} parent=0 // pred_check
    _
  $region3: #{mlp_vi_forward.1} parent=0 // pred_check_branch
    %13 = sbr.rel (0) target = $region5
  $region4: #{mlp_vi_forward.1} parent=0 // pred_region
    _
  $region5: #{mlp_vi_forward.1} parent=0 // pred_fallthru
    _
  // Predicated region
  $region6: #{mlp_vi_forward.1} parent=0 // pred_check
    _
  $region7: #{mlp_vi_forward.1} parent=0 // pred_check_branch
    %15 = sbr.rel (0) target = $region9
  $region8: #{mlp_vi_forward.1} parent=0 // pred_region
    _
  $region9: #{mlp_vi_forward.1} parent=0 // pred_fallthru
    _
  // Predicated region
  $region10: #{mlp_vi_forward.1} parent=0 // pred_check
    _
  $region11: #{mlp_vi_forward.1} parent=0 // pred_check_branch
    %17 = sbr.rel (0) target = $region13
  $region12: #{mlp_vi_forward.1} parent=0 // pred_region
    _
  $region13: #{mlp_vi_forward.1} parent=0 // pred_fallthru
    _
  // Predicated region
  $region14: #{mlp_vi_forward.1} parent=0 // pred_check
    _
  $region15: #{mlp_vi_forward.1} parent=0 // pred_check_branch
    %19 = sbr.rel (0) target = $region17
  $region16: #{mlp_vi_forward.1} parent=0 // pred_region
    _
  $region17: #{mlp_vi_forward.1} parent=0 // pred_fallthru
    _
  // Predicated region
  $region18: #{mlp_vi_forward.1} parent=0 // pred_check
    _
  $region19: #{mlp_vi_forward.1} parent=0 // pred_check_branch
    %21 = sbr.rel (0) target = $region21
  $region20: #{mlp_vi_forward.1} parent=0 // pred_region
    _
  $region21: #{mlp_vi_forward.1} parent=0 // pred_fallthru
    _
  // Predicated region
  $region22: #{mlp_vi_forward.1} parent=0 // pred_check
    _
  $region23: #{mlp_vi_forward.1} parent=0 // pred_check_branch
    %23 = sbr.rel (0) target = $region25
  $region24: #{mlp_vi_forward.1} parent=0 // pred_region
    _
  $region25: #{mlp_vi_forward.1} parent=0 // pred_fallthru
    _
  // Predicated region
  $region26: #{mlp_vi_forward.1} parent=0 // pred_check
    _
  $region27: #{mlp_vi_forward.1} parent=0 // pred_check_branch
    %25 = sbr.rel (0) target = $region29
  $region28: #{mlp_vi_forward.1} parent=0 // pred_region
    _
  $region29: #{mlp_vi_forward.1} parent=0 // pred_fallthru
    _
  %v26 = vld [vmem:[%s0] sm:$0xff]
  %v27 = vld [vmem:[%s1] sm:$0xff]
  %v28 = vld [vmem:[%s1 + $0x8] sm:$0xff]
  %v29 = vld [vmem:[%s1 + $0x10] sm:$0xff]
  %v30 = vld [vmem:[%s1 + $0x18] sm:$0xff]
  %v31 = vld [vmem:[%s1 + $0x20] sm:$0xff]
  %v32 = vld [vmem:[%s1 + $0x28] sm:$0xff]
  %v33 = vld [vmem:[%s1 + $0x30] sm:$0xff]
  %v34 = vld [vmem:[%s1 + $0x38] sm:$0xff]
  %v35 = vld [vmem:[%s1 + $0x40] sm:$0xff]
  %v36 = vld [vmem:[%s1 + $0x48] sm:$0xff]
  %v37 = vld [vmem:[%s1 + $0x50] sm:$0xff]
  %v38 = vld [vmem:[%s1 + $0x58] sm:$0xff]
  %v39 = vld [vmem:[%s1 + $0x60] sm:$0xff]
  %v40 = vld [vmem:[%s1 + $0x68] sm:$0xff]
  %v41 = vld [vmem:[%s1 + $0x70] sm:$0xff]
  %v42 = vld [vmem:[%s1 + $0x78] sm:$0xff]
  %v43 = vld [vmem:[%s2] sm:$0x1]
  %v45 = vperm.slane %v43, 0
  %47 = vmatpush.msra.mxu0 %v42
  %48 = vmatpush.msra.mxu0 %v41
  %49 = vmatpush.msra.mxu0 %v40
  %50 = vmatpush.msra.mxu0 %v39
  %51 = vmatpush.msra.mxu0 %v38
  %52 = vmatpush.msra.mxu0 %v37
  %53 = vmatpush.msra.mxu0 %v36
  %54 = vmatpush.msra.mxu0 %v35
  %55 = vmatpush.msra.mxu0 %v34
  %56 = vmatpush.msra.mxu0 %v33
  %57 = vmatpush.msra.mxu0 %v32
  %58 = vmatpush.msra.mxu0 %v31
  %59 = vmatpush.msra.mxu0 %v30
  %60 = vmatpush.msra.mxu0 %v29
  %61 = vmatpush.msra.mxu0 %v28
  %62 = vmatpush.msra.mxu0 %v27
  %63 = vmatmul.f32.gmra.mxu0 %v26
  %v64 = vpop.f32.mrf.mxu0
  %v65 = vadd.f32 %v45, %v64
  %66 = vdwg.mxu0
  %v67 = vmax.f32 %v65, 0.0
  %v68 = vld [vmem:[%s3] sm:$0xff]
  %v69 = vld [vmem:[%s3 + $0x8] sm:$0xff]
  %v70 = vld [vmem:[%s3 + $0x10] sm:$0xff]
  %v71 = vld [vmem:[%s3 + $0x18] sm:$0xff]
  %v72 = vld [vmem:[%s3 + $0x20] sm:$0xff]
  %v73 = vld [vmem:[%s3 + $0x28] sm:$0xff]
  %v74 = vld [vmem:[%s3 + $0x30] sm:$0xff]
  %v75 = vld [vmem:[%s3 + $0x38] sm:$0xff]
  %v76 = vld [vmem:[%s3 + $0x40] sm:$0xff]
  %v77 = vld [vmem:[%s3 + $0x48] sm:$0xff]
  %v78 = vld [vmem:[%s3 + $0x50] sm:$0xff]
  %v79 = vld [vmem:[%s3 + $0x58] sm:$0xff]
  %v80 = vld [vmem:[%s3 + $0x60] sm:$0xff]
  %v81 = vld [vmem:[%s3 + $0x68] sm:$0xff]
  %v82 = vld [vmem:[%s3 + $0x70] sm:$0xff]
  %v83 = vld [vmem:[%s3 + $0x78] sm:$0xff]
  %v84 = vld [vmem:[%s4] sm:$0x1]
  %v86 = vperm.slane %v84, 0
  %88 = vmatpush.msra.mxu0 %v83
  %89 = vmatpush.msra.mxu0 %v82
  %90 = vmatpush.msra.mxu0 %v81
  %91 = vmatpush.msra.mxu0 %v80
  %92 = vmatpush.msra.mxu0 %v79
  %93 = vmatpush.msra.mxu0 %v78
  %94 = vmatpush.msra.mxu0 %v77
  %95 = vmatpush.msra.mxu0 %v76
  %96 = vmatpush.msra.mxu0 %v75
  %97 = vmatpush.msra.mxu0 %v74
  %98 = vmatpush.msra.mxu0 %v73
  %99 = vmatpush.msra.mxu0 %v72
  %100 = vmatpush.msra.mxu0 %v71
  %101 = vmatpush.msra.mxu0 %v70
  %102 = vmatpush.msra.mxu0 %v69
  %103 = vmatpush.msra.mxu0 %v68
  %104 = vmatmul.f32.gmra.mxu0 %v67
  %v105 = vpop.f32.mrf.mxu0
  %v106 = vadd.f32 %v86, %v105
  %107 = vdwg.mxu0
  %v108 = vmax.f32 %v106, 0.0
  %v109 = vld [vmem:[%s5] sm:$0xff]
  %v110 = vld [vmem:[%s5 + $0x8] sm:$0xff]
  %v111 = vld [vmem:[%s5 + $0x10] sm:$0xff]
  %v112 = vld [vmem:[%s5 + $0x18] sm:$0xff]
  %v113 = vld [vmem:[%s5 + $0x20] sm:$0xff]
  %v114 = vld [vmem:[%s5 + $0x28] sm:$0xff]
  %v115 = vld [vmem:[%s5 + $0x30] sm:$0xff]
  %v116 = vld [vmem:[%s5 + $0x38] sm:$0xff]
  %v117 = vld [vmem:[%s5 + $0x40] sm:$0xff]
  %v118 = vld [vmem:[%s5 + $0x48] sm:$0xff]
  %v119 = vld [vmem:[%s5 + $0x50] sm:$0xff]
  %v120 = vld [vmem:[%s5 + $0x58] sm:$0xff]
  %v121 = vld [vmem:[%s5 + $0x60] sm:$0xff]
  %v122 = vld [vmem:[%s5 + $0x68] sm:$0xff]
  %v123 = vld [vmem:[%s5 + $0x70] sm:$0xff]
  %v124 = vld [vmem:[%s5 + $0x78] sm:$0xff]
  %v125 = vld [vmem:[%s6] sm:$0x1]
  %v127 = vperm.slane %v125, 0
  %129 = vmatpush.msra.mxu0 %v124
  %130 = vmatpush.msra.mxu0 %v123
  %131 = vmatpush.msra.mxu0 %v122
  %132 = vmatpush.msra.mxu0 %v121
  %133 = vmatpush.msra.mxu0 %v120
  %134 = vmatpush.msra.mxu0 %v119
  %135 = vmatpush.msra.mxu0 %v118
  %136 = vmatpush.msra.mxu0 %v117
  %137 = vmatpush.msra.mxu0 %v116
  %138 = vmatpush.msra.mxu0 %v115
  %139 = vmatpush.msra.mxu0 %v114
  %140 = vmatpush.msra.mxu0 %v113
  %141 = vmatpush.msra.mxu0 %v112
  %142 = vmatpush.msra.mxu0 %v111
  %143 = vmatpush.msra.mxu0 %v110
  %144 = vmatpush.msra.mxu0 %v109
  %145 = vmatmul.f32.gmra.mxu0 %v108
  %v146 = vpop.f32.mrf.mxu0
  %v147 = vadd.f32 %v127, %v146
  %148 = vdwg.mxu0
  %149 = vst [vmem:[%s7] sm:$0xff] %v147
  // Predicated region
  $region30: #{mlp_vi_forward.1} parent=0 // pred_check
    _
  $region31: #{mlp_vi_forward.1} parent=0 // pred_check_branch
    %151 = sbr.rel (0) target = $region33
  $region32: #{mlp_vi_forward.1} parent=0 // pred_region
    _
  $region33: #{mlp_vi_forward.1} parent=0 // pred_fallthru
    _
  // Predicated region
  $region34: #{mlp_vi_forward.1} parent=0 // pred_check
    _
  $region35: #{mlp_vi_forward.1} parent=0 // pred_check_branch
    %153 = sbr.rel (0) target = $region37
  $region36: #{mlp_vi_forward.1} parent=0 // pred_region
    _
  $region37: #{mlp_vi_forward.1} parent=0 // pred_fallthru
    _

// kernel: mlp_vi_forward.1
$region0: #{mlp_vi_forward.1}
  #allocation0 [shape = 'u32[]', space=smem, size = 0x4, offset = 0x4, fixed_abs, tag = 'smem constant byte address 0x4 - core index']
  #allocation1 [shape = 'u32[72,128]{1,0:T(1,128)}', space=vmem, size = 0x9000, scoped, tag = 'internal scratch']
  %s0 = inlined_call_operand.vmem [shape: f32[8,128], index: 0, kind: input, shape index: {}]
  %s1 = inlined_call_operand.vmem [shape: f32[128,128], index: 1, kind: input, shape index: {}]
  %s2 = inlined_call_operand.vmem [shape: f32[1,128], index: 2, kind: input, shape index: {}]
  %s3 = inlined_call_operand.vmem [shape: f32[128,128], index: 3, kind: input, shape index: {}]
  %s4 = inlined_call_operand.vmem [shape: f32[1,128], index: 4, kind: input, shape index: {}]
  %s5 = inlined_call_operand.vmem [shape: f32[128,128], index: 5, kind: input, shape index: {}]
  %s6 = inlined_call_operand.vmem [shape: f32[1,128], index: 6, kind: input, shape index: {}]
  %s7 = inlined_call_operand.vmem [shape: f32[8,128], index: 7, kind: output, shape index: {}]
  %s8 = sld [smem:[#allocation0]]
  $region38: #{mlp_vi_forward.1} parent=0
    _
  %s10 = ssub.s32 1, %s8
  %s11 = scalar_select 0, %s10, %s8
  // Predicated region
  $region2: #{mlp_vi_forward.1} parent=0 // pred_check
    _
  $region3: #{mlp_vi_forward.1} parent=0 // pred_check_branch
    %13 = sbr.rel (0) target = $region5
  $region4: #{mlp_vi_forward.1} parent=0 // pred_region
    _
  $region5: #{mlp_vi_forward.1} parent=0 // pred_fallthru
    _
  // Predicated region
  $region6: #{mlp_vi_forward.1} parent=0 // pred_check
    _
  $region7: #{mlp_vi_forward.1} parent=0 // pred_check_branch
    %15 = sbr.rel (0) target = $region9
  $region8: #{mlp_vi_forward.1} parent=0 // pred_region
    _
  $region9: #{mlp_vi_forward.1} parent=0 // pred_fallthru
    _
  // Predicated region
  $region10: #{mlp_vi_forward.1} parent=0 // pred_check
    _
  $region11: #{mlp_vi_forward.1} parent=0 // pred_check_branch
    %17 = sbr.rel (0) target = $region13
  $region12: #{mlp_vi_forward.1} parent=0 // pred_region
    _
  $region13: #{mlp_vi_forward.1} parent=0 // pred_fallthru
    _
  // Predicated region
  $region14: #{mlp_vi_forward.1} parent=0 // pred_check
    _
  $region15: #{mlp_vi_forward.1} parent=0 // pred_check_branch
    %19 = sbr.rel (0) target = $region17
  $region16: #{mlp_vi_forward.1} parent=0 // pred_region
    _
  $region17: #{mlp_vi_forward.1} parent=0 // pred_fallthru
    _
  // Predicated region
  $region18: #{mlp_vi_forward.1} parent=0 // pred_check
    _
  $region19: #{mlp_vi_forward.1} parent=0 // pred_check_branch
    %21 = sbr.rel (0) target = $region21
  $region20: #{mlp_vi_forward.1} parent=0 // pred_region
    _
  $region21: #{mlp_vi_forward.1} parent=0 // pred_fallthru
    _
  // Predicated region
  $region22: #{mlp_vi_forward.1} parent=0 // pred_check
    _
  $region23: #{mlp_vi_forward.1} parent=0 // pred_check_branch
    %23 = sbr.rel (0) target = $region25
  $region24: #{mlp_vi_forward.1} parent=0 // pred_region
    _
  $region25: #{mlp_vi_forward.1} parent=0 // pred_fallthru
    _
  // Predicated region
  $region26: #{mlp_vi_forward.1} parent=0 // pred_check
    _
  $region27: #{mlp_vi_forward.1} parent=0 // pred_check_branch
    %25 = sbr.rel (0) target = $region29
  $region28: #{mlp_vi_forward.1} parent=0 // pred_region
    _
  $region29: #{mlp_vi_forward.1} parent=0 // pred_fallthru
    _
  %v26 = vld [vmem:[%s0] sm:$0xff]
  %v27 = vld [vmem:[%s1] sm:$0xff]
  %v28 = vld [vmem:[%s1 + $0x8] sm:$0xff]
  %v29 = vld [vmem:[%s1 + $0x10] sm:$0xff]
  %v30 = vld [vmem:[%s1 + $0x18] sm:$0xff]
  %v31 = vld [vmem:[%s1 + $0x20] sm:$0xff]
  %v32 = vld [vmem:[%s1 + $0x28] sm:$0xff]
  %v33 = vld [vmem:[%s1 + $0x30] sm:$0xff]
  %v34 = vld [vmem:[%s1 + $0x38] sm:$0xff]
  %v35 = vld [vmem:[%s1 + $0x40] sm:$0xff]
  %v36 = vld [vmem:[%s1 + $0x48] sm:$0xff]
  %v37 = vld [vmem:[%s1 + $0x50] sm:$0xff]
  %v38 = vld [vmem:[%s1 + $0x58] sm:$0xff]
  %v39 = vld [vmem:[%s1 + $0x60] sm:$0xff]
  %v40 = vld [vmem:[%s1 + $0x68] sm:$0xff]
  %v41 = vld [vmem:[%s1 + $0x70] sm:$0xff]
  %v42 = vld [vmem:[%s1 + $0x78] sm:$0xff]
  %v43 = vld [vmem:[%s2] sm:$0x1]
  %v45 = vperm.slane %v43, 0
  %47 = vmatpush.msra.mxu0 %v42
  %48 = vmatpush.msra.mxu0 %v41
  %49 = vmatpush.msra.mxu0 %v40
  %50 = vmatpush.msra.mxu0 %v39
  %51 = vmatpush.msra.mxu0 %v38
  %52 = vmatpush.msra.mxu0 %v37
  %53 = vmatpush.msra.mxu0 %v36
  %54 = vmatpush.msra.mxu0 %v35
  %55 = vmatpush.msra.mxu0 %v34
  %56 = vmatpush.msra.mxu0 %v33
  %57 = vmatpush.msra.mxu0 %v32
  %58 = vmatpush.msra.mxu0 %v31
  %59 = vmatpush.msra.mxu0 %v30
  %60 = vmatpush.msra.mxu0 %v29
  %61 = vmatpush.msra.mxu0 %v28
  %62 = vmatpush.msra.mxu0 %v27
  %63 = vmatmul.f32.gmra.mxu0 %v26
  %v64 = vpop.f32.mrf.mxu0
  %v65 = vadd.f32 %v45, %v64
  %66 = vdwg.mxu0
  %v67 = vmax.f32 %v65, 0.0
  %v68 = vld [vmem:[%s3] sm:$0xff]
  %v69 = vld [vmem:[%s3 + $0x8] sm:$0xff]
  %v70 = vld [vmem:[%s3 + $0x10] sm:$0xff]
  %v71 = vld [vmem:[%s3 + $0x18] sm:$0xff]
  %v72 = vld [vmem:[%s3 + $0x20] sm:$0xff]
  %v73 = vld [vmem:[%s3 + $0x28] sm:$0xff]
  %v74 = vld [vmem:[%s3 + $0x30] sm:$0xff]
  %v75 = vld [vmem:[%s3 + $0x38] sm:$0xff]
  %v76 = vld [vmem:[%s3 + $0x40] sm:$0xff]
  %v77 = vld [vmem:[%s3 + $0x48] sm:$0xff]
  %v78 = vld [vmem:[%s3 + $0x50] sm:$0xff]
  %v79 = vld [vmem:[%s3 + $0x58] sm:$0xff]
  %v80 = vld [vmem:[%s3 + $0x60] sm:$0xff]
  %v81 = vld [vmem:[%s3 + $0x68] sm:$0xff]
  %v82 = vld [vmem:[%s3 + $0x70] sm:$0xff]
  %v83 = vld [vmem:[%s3 + $0x78] sm:$0xff]
  %v84 = vld [vmem:[%s4] sm:$0x1]
  %v86 = vperm.slane %v84, 0
  %88 = vmatpush.msra.mxu0 %v83
  %89 = vmatpush.msra.mxu0 %v82
  %90 = vmatpush.msra.mxu0 %v81
  %91 = vmatpush.msra.mxu0 %v80
  %92 = vmatpush.msra.mxu0 %v79
  %93 = vmatpush.msra.mxu0 %v78
  %94 = vmatpush.msra.mxu0 %v77
  %95 = vmatpush.msra.mxu0 %v76
  %96 = vmatpush.msra.mxu0 %v75
  %97 = vmatpush.msra.mxu0 %v74
  %98 = vmatpush.msra.mxu0 %v73
  %99 = vmatpush.msra.mxu0 %v72
  %100 = vmatpush.msra.mxu0 %v71
  %101 = vmatpush.msra.mxu0 %v70
  %102 = vmatpush.msra.mxu0 %v69
  %103 = vmatpush.msra.mxu0 %v68
  %104 = vmatmul.f32.gmra.mxu0 %v67
  %v105 = vpop.f32.mrf.mxu0
  %v106 = vadd.f32 %v86, %v105
  %107 = vdwg.mxu0
  %v108 = vmax.f32 %v106, 0.0
  %v109 = vld [vmem:[%s5] sm:$0xff]
  %v110 = vld [vmem:[%s5 + $0x8] sm:$0xff]
  %v111 = vld [vmem:[%s5 + $0x10] sm:$0xff]
  %v112 = vld [vmem:[%s5 + $0x18] sm:$0xff]
  %v113 = vld [vmem:[%s5 + $0x20] sm:$0xff]
  %v114 = vld [vmem:[%s5 + $0x28] sm:$0xff]
  %v115 = vld [vmem:[%s5 + $0x30] sm:$0xff]
  %v116 = vld [vmem:[%s5 + $0x38] sm:$0xff]
  %v117 = vld [vmem:[%s5 + $0x40] sm:$0xff]
  %v118 = vld [vmem:[%s5 + $0x48] sm:$0xff]
  %v119 = vld [vmem:[%s5 + $0x50] sm:$0xff]
  %v120 = vld [vmem:[%s5 + $0x58] sm:$0xff]
  %v121 = vld [vmem:[%s5 + $0x60] sm:$0xff]
  %v122 = vld [vmem:[%s5 + $0x68] sm:$0xff]
  %v123 = vld [vmem:[%s5 + $0x70] sm:$0xff]
  %v124 = vld [vmem:[%s5 + $0x78] sm:$0xff]
  %v125 = vld [vmem:[%s6] sm:$0x1]
  %v127 = vperm.slane %v125, 0
  %129 = vmatpush.msra.mxu0 %v124
  %130 = vmatpush.msra.mxu0 %v123
  %131 = vmatpush.msra.mxu0 %v122
  %132 = vmatpush.msra.mxu0 %v121
  %133 = vmatpush.msra.mxu0 %v120
  %134 = vmatpush.msra.mxu0 %v119
  %135 = vmatpush.msra.mxu0 %v118
  %136 = vmatpush.msra.mxu0 %v117
  %137 = vmatpush.msra.mxu0 %v116
  %138 = vmatpush.msra.mxu0 %v115
  %139 = vmatpush.msra.mxu0 %v114
  %140 = vmatpush.msra.mxu0 %v113
  %141 = vmatpush.msra.mxu0 %v112
  %142 = vmatpush.msra.mxu0 %v111
  %143 = vmatpush.msra.mxu0 %v110
  %144 = vmatpush.msra.mxu0 %v109
  %145 = vmatmul.f32.gmra.mxu0 %v108
  %v146 = vpop.f32.mrf.mxu0
  %v147 = vadd.f32 %v127, %v146
  %148 = vdwg.mxu0
  %149 = vst [vmem:[%s7] sm:$0xff] %v147
  // Predicated region
  $region30: #{mlp_vi_forward.1} parent=0 // pred_check
    _
  $region31: #{mlp_vi_forward.1} parent=0 // pred_check_branch
    %151 = sbr.rel (0) target = $region33
  $region32: #{mlp_vi_forward.1} parent=0 // pred_region
    _
  $region33: #{mlp_vi_forward.1} parent=0 // pred_fallthru
    _
  // Predicated region
  $region34: #{mlp_vi_forward.1} parent=0 // pred_check
    _
  $region35: #{mlp_vi_forward.1} parent=0 // pred_check_branch
    %153 = sbr.rel (0) target = $region37
  $region36: #{mlp_vi_forward.1} parent=0 // pred_region
    _
  $region37: #{mlp_vi_forward.1} parent=0 // pred_fallthru
    _

</llo_original>
